<compile_context>
chip_gen: v7x
topology: tpu7x:2x2x1
jax: 0.10.0
libtpu: 0.0.40
codegen_flags: <defaults>
</compile_context>

<pallas_src>
import functools

import jax
import jax.numpy as jnp
from jax.experimental import pallas as pl
from jax.experimental.pallas import tpu as pltpu


_VMEM_LIMIT_BYTES = 32 * 1024 * 1024   # safe on v5e/v6e (128 MiB) and v7x (64 MiB)


def _round_down(x, m):
    return (x // m) * m


def _choose_batch_tile(batch, bytes_per_row, *, target_bytes, align=256):
    """Largest batch tile (multiple of `align`) near `target_bytes` of rows;
    small batches collapse to a single full block."""
    tm = _round_down(max(target_bytes // max(bytes_per_row, 1), align), align)
    tm = max(tm, align)
    # TODO(synk): tile num_feature as well if even a minimum-height row block
    # cannot fit the VMEM budget (not reachable at this module's scale).
    return batch if tm >= batch else tm


# ------------------------------ kernel bodies -------------------------------

def _prior_rowdot_kernel(x_ref, beta_ref, o_ref):
    """num_output == 1: VPU broadcast-multiply + lane reduction (no MXU).

    x_ref    : (tm, F)
    beta_ref : (1, F)   -- constant block index => resident across batch tiles
    o_ref    : (1, tm)  -- lane-dense output block (batch rows along lanes)
    """
    prod = x_ref[...].astype(jnp.float32) * beta_ref[...]       # (tm, F)
    acc = jnp.sum(prod, axis=-1, keepdims=True)                 # (tm, 1)
    # (tm, 1) -> (1, tm): small in-kernel relayout so the store is an
    # unmasked lane-dense vst instead of tm/8 single-lane masked stores.
    o_ref[...] = jnp.transpose(acc).astype(o_ref.dtype)


def _prior_matmul_kernel(x_ref, beta_ref, o_ref):
    """num_output > 1: MXU matmul with f32 accumulation.

    x_ref    : (tm, F)  -- resident across the inner output-tile grid axis
    beta_ref : (F, tn)
    o_ref    : (tm, tn)
    """
    x = x_ref[...]
    beta = beta_ref[...].astype(x.dtype)      # bf16 x -> bf16 MXU fast path
    o_ref[...] = jnp.dot(
        x, beta, preferred_element_type=jnp.float32).astype(o_ref.dtype)


# --------------------------------- wrapper ----------------------------------

@functools.partial(jax.jit, static_argnames=("scale", "num_output"))
def main_prior_forward(x, key, *, scale, num_output=1):
    """Pallas implementation of Main_Prior.forward.

    x   : (batch, num_feature)
    key : jax PRNG key -- a fresh beta draw per key (torch.randn analogue)
    """
    batch, num_feature = x.shape
    itemsize = jnp.dtype(x.dtype).itemsize

    # beta ~ N(0, scale^2), sampled once per call (matches torch.randn * scale).
    beta = jax.random.normal(
        key, (num_feature, num_output), dtype=jnp.float32) * jnp.float32(scale)

    flops = 2 * batch * num_feature * num_output
    bytes_accessed = (batch * num_feature + num_feature * num_output
                      + batch * num_output) * itemsize
    cost = pl.CostEstimate(flops=flops, transcendentals=0,
                           bytes_accessed=bytes_accessed)

    if num_output == 1:
        # ~4 MiB x tile (double-buffered => ~8 MiB) + tiny beta row + tiny out.
        tm = _choose_batch_tile(batch, num_feature * itemsize,
                                target_bytes=4 << 20)
        grid = (pl.cdiv(batch, tm),)
        beta_row = beta.reshape(1, num_feature)

        out_flat = pl.pallas_call(
            _prior_rowdot_kernel,
            out_shape=jax.ShapeDtypeStruct((1, batch), x.dtype),
            grid=grid,
            in_specs=[
                pl.BlockSpec((tm, num_feature), lambda i: (i, 0)),
                pl.BlockSpec((1, num_feature), lambda i: (0, 0)),
            ],
            out_specs=pl.BlockSpec((1, tm), lambda i: (0, i)),
            compiler_params=pltpu.CompilerParams(
                dimension_semantics=("parallel",),
                vmem_limit_bytes=_VMEM_LIMIT_BYTES,
            ),
            cost_estimate=cost,
        )(x, beta_row)
        return out_flat.reshape(batch, 1)

    # num_output > 1: MXU path, output dimension tiled lane-dense.
    tn = num_output if num_output <= 256 else 256
    if num_feature * tn * itemsize * 2 > (8 << 20) and tn > 128:
        tn = 128   # keep the double-buffered beta column block modest
    # TODO(synk): K-tile num_feature with a VMEM f32 accumulator when the
    # (num_feature, tn) beta block alone exceeds the VMEM budget.
    tm = _choose_batch_tile(batch, (num_feature + tn) * itemsize,
                            target_bytes=3 << 20)
    grid = (pl.cdiv(batch, tm), pl.cdiv(num_output, tn))

    return pl.pallas_call(
        _prior_matmul_kernel,
        out_shape=jax.ShapeDtypeStruct((batch, num_output), x.dtype),
        grid=grid,
        in_specs=[
            pl.BlockSpec((tm, num_feature), lambda i, j: (i, 0)),
            pl.BlockSpec((num_feature, tn), lambda i, j: (0, j)),
        ],
        out_specs=pl.BlockSpec((tm, tn), lambda i, j: (i, j)),
        compiler_params=pltpu.CompilerParams(
            dimension_semantics=("parallel", "parallel"),
            vmem_limit_bytes=_VMEM_LIMIT_BYTES,
        ),
        cost_estimate=cost,
    )(x, beta)


# ----------------------------------- demo -----------------------------------

if __name__ == "__main__":
    # Shapes consistent with the module: Main_Prior(num_feature=32, scale=0.5).
    batch = 8
    num_feature = 32
    scale = 0.5

    root = jax.random.PRNGKey(0)
    kx, kbeta = jax.random.split(root)
    x = jax.random.normal(kx, (batch, num_feature), dtype=jnp.float32)

    # num_output == 1 (module default): rowdot path.
    out = jax.block_until_ready(
        main_prior_forward(x, kbeta, scale=scale, num_output=1))
    beta1 = jax.random.normal(kbeta, (num_feature, 1), jnp.float32) * scale
    ref1 = jnp.dot(x, beta1, precision=jax.lax.Precision.HIGHEST)
    assert out.shape == (batch, 1)
    assert bool(jnp.all(jnp.isfinite(out)))
    assert jnp.allclose(out, ref1, atol=1e-4, rtol=1e-4)

    # num_output > 1: MXU path.
    num_output = 4
    out2 = jax.block_until_ready(
        main_prior_forward(x, kbeta, scale=scale, num_output=num_output))
    beta2 = jax.random.normal(kbeta, (num_feature, num_output),
                              jnp.float32) * scale
    ref2 = jnp.dot(x, beta2, precision=jax.lax.Precision.HIGHEST)
    assert out2.shape == (batch, num_output)
    assert jnp.allclose(out2, ref2, atol=1e-4, rtol=1e-4)

    # Determinism contract: same key -> same prior draw -> same output.
    out3 = jax.block_until_ready(
        main_prior_forward(x, kbeta, scale=scale, num_output=1))
    assert bool(jnp.array_equal(out, out3))

    print("KERNEL_OK")
</pallas_src>

<mosaic_0001>
module attributes {stable_mosaic.version = 11 : i64} {
  func.func @_prior_rowdot_kernel(%arg0: i32, %arg1: memref<8x32xf32, #tpu.memory_space<vmem>>, %arg2: memref<1x32xf32, #tpu.memory_space<vmem>>, %arg3: memref<1x8xf32, #tpu.memory_space<vmem>>) attributes {dimension_semantics = [#tpu.dimension_semantics<parallel>], iteration_bounds = array<i64: 1>, scalar_prefetch = 0 : i64, scratch_operands = 0 : i64, tpu.core_type = #tpu.core_type<tc>, window_params = [{transform_indices = @transform_0, window_bounds = array<i64: 8, 32>}, {pipeline_mode = #tpu.pipeline_mode<synchronous>, transform_indices = @transform_1, window_bounds = array<i64: 1, 32>}, {transform_indices = @transform_2, window_bounds = array<i64: 1, 8>}]} {
    %c0 = arith.constant 0 : index
    %c0_0 = arith.constant 0 : index
    %0 = vector.load %arg1[%c0, %c0_0] : memref<8x32xf32, #tpu.memory_space<vmem>>, vector<8x32xf32>
    %c0_1 = arith.constant 0 : index
    %c0_2 = arith.constant 0 : index
    %1 = vector.load %arg2[%c0_1, %c0_2] : memref<1x32xf32, #tpu.memory_space<vmem>>, vector<1x32xf32>
    %2 = vector.broadcast %1 : vector<1x32xf32> to vector<8x32xf32>
    %3 = arith.mulf %0, %2 : vector<8x32xf32>
    %cst = arith.constant dense<0.000000e+00> : vector<8xf32>
    %4 = vector.multi_reduction <add>, %3, %cst [1] : vector<8x32xf32> to vector<8xf32>
    %5 = vector.shape_cast %4 : vector<8xf32> to vector<8x1xf32>
    %6 = tpu.transpose %5, [1, 0] : vector<8x1xf32> -> vector<1x8xf32>
    %c0_3 = arith.constant 0 : index
    %c0_4 = arith.constant 0 : index
    %7 = vector.load %arg3[%c0_3, %c0_4] : memref<1x8xf32, #tpu.memory_space<vmem>>, vector<1x8xf32>
    tpu.vector_store %arg3[%c0_3, %c0_4], %6 {strides = array<i32>} : memref<1x8xf32, #tpu.memory_space<vmem>>, vector<1x8xf32>,
    return
  }
  func.func @transform_0(%arg0: i32) -> (i32, i32) {
    %c0_i32 = arith.constant 0 : i32
    %c0_i32_0 = arith.constant 0 : i32
    return %arg0, %c0_i32 : i32, i32
  }
  func.func @transform_1(%arg0: i32) -> (i32, i32) {
    %c0_i32 = arith.constant 0 : i32
    %c0_i32_0 = arith.constant 0 : i32
    %c0_i32_1 = arith.constant 0 : i32
    return %c0_i32, %c0_i32_0 : i32, i32
  }
  func.func @transform_2(%arg0: i32) -> (i32, i32) {
    %c0_i32 = arith.constant 0 : i32
    %c0_i32_0 = arith.constant 0 : i32
    return %c0_i32, %arg0 : i32, i32
  }
}

</mosaic_0001>

<llo_original>
// kernel: main_prior_forward.1
$region0: #{main_prior_forward.1}
  #allocation0 [shape = 'u32[]', space=smem, size = 0x4, offset = 0x4, fixed_abs, tag = 'smem constant byte address 0x4 - core index']
  #allocation1 [shape = 'u32[144,128]{1,0:T(1,128)}', space=vmem, size = 0x12000, scoped, tag = 'internal scratch']
  %s0 = inlined_call_operand.vmem [shape: f32[8,32], index: 0, kind: input, shape index: {}]
  %s1 = inlined_call_operand.vmem [shape: f32[1,32], index: 1, kind: input, shape index: {}]
  %s2 = inlined_call_operand.hbm [shape: f32[1,8], index: 2, kind: output, shape index: {}]
  %s3 = sld [smem:[#allocation0]]
  $region18: #{main_prior_forward.1} parent=0
    _
  %s5 = ssub.s32 1, %s3
  %s6 = scalar_select 0, %s5, %s3
  $region1: #{main_prior_forward.1} parent=0
    #allocation2 [shape = 'u8[512]{0}', space=vmem, size = 0x400, scoped, tag = 'output window, operand 0, single buffered']
    #allocation3 [shape = 's32[1]{0}', space=sflag, size = 0x4, scoped, tag = 'scoped memory for main_prior_forward.1']
    %7 = vsyncpa [#allocation3], 0
    // Predicated region
    $region2: #{main_prior_forward.1} parent=1 // pred_check
      _
    $region3: #{main_prior_forward.1} parent=1 // pred_check_branch
      %9 = sbr.rel (0) target = $region5
    $region4: #{main_prior_forward.1} parent=1 // pred_region
      _
    $region5: #{main_prior_forward.1} parent=1 // pred_fallthru
      _
    // Predicated region
    $region6: #{main_prior_forward.1} parent=1 // pred_check
      _
    $region7: #{main_prior_forward.1} parent=1 // pred_check_branch
      %11 = sbr.rel (0) target = $region9
    $region8: #{main_prior_forward.1} parent=1 // pred_region
      _
    $region9: #{main_prior_forward.1} parent=1 // pred_fallthru
      _
    %v12 = vld [vmem:[%s0] sm:$0xff]
    %v13 = vld [vmem:[%s1] sm:$0x1]
    %v15 = vlaneseq
    %v16 = vshrl.u32 %v15, 7
    %v17 = vsub.s32 0, %v16
    %v18 = vrot.slane %v13, %v17
    %v20 = vmul.f32 %v12, %v18
    %vm21 = vcmask 261120
    %v22 = vsel %vm21, %v20, 0.0
    %23 = vadd.xlane.f32.xlu0 %v22
    %v24 = vpop.xlane.xlu0 %23
    %25 = vxpose.xlu0.b32.start [1/16] %v24, 128
    %26 = vxpose.xlu0.b32.cont [2/16] 0.0, 128
    %27 = vxpose.xlu0.b32.cont [3/16] 0.0, 128
    %28 = vxpose.xlu0.b32.cont [4/16] 0.0, 128
    %29 = vxpose.xlu0.b32.cont [5/16] 0.0, 128
    %30 = vxpose.xlu0.b32.cont [6/16] 0.0, 128
    %31 = vxpose.xlu0.b32.cont [7/16] 0.0, 128
    %32 = vxpose.xlu0.b32.cont [8/16] 0.0, 128
    %33 = vxpose.xlu0.b32.cont [9/16] 0.0, 128
    %34 = vxpose.xlu0.b32.cont [10/16] 0.0, 128
    %35 = vxpose.xlu0.b32.cont [11/16] 0.0, 128
    %36 = vxpose.xlu0.b32.cont [12/16] 0.0, 128
    %37 = vxpose.xlu0.b32.cont [13/16] 0.0, 128
    %38 = vxpose.xlu0.b32.cont [14/16] 0.0, 128
    %39 = vxpose.xlu0.b32.cont [15/16] 0.0, 128
    %40 = vxpose.xlu0.b32.end [16/16] 0.0, 128
    %v41 = vpop.trf.xlu0
    %v42 = vpop.trf.xlu0
    %v43 = vpop.trf.xlu0
    %v44 = vpop.trf.xlu0
    %v45 = vpop.trf.xlu0
    %v46 = vpop.trf.xlu0
    %v47 = vpop.trf.xlu0
    %v48 = vpop.trf.xlu0
    %v49 = vpop.trf.xlu0
    %v50 = vpop.trf.xlu0
    %v51 = vpop.trf.xlu0
    %v52 = vpop.trf.xlu0
    %v53 = vpop.trf.xlu0
    %v54 = vpop.trf.xlu0
    %v55 = vpop.trf.xlu0
    %v56 = vpop.trf.xlu0
    %vm57 = vcmask 57344
    %58 = vst.msk [vmem:[#allocation2] sm:$0x1] %vm57, %v41
    // Predicated region
    $region10: #{main_prior_forward.1} parent=1 // pred_check
      _
    $region11: #{main_prior_forward.1} parent=1 // pred_check_branch
      %60 = sbr.rel (0) target = $region13
    $region12: #{main_prior_forward.1} parent=1 // pred_region
      %s62 = ssub.s32 16, 16
      %63 = vsyncadd [#allocation3], %s62
      %s65 = sshll.u32 [#allocation2], 4
      %s66 = int_to_ptr.vmem [resolvable:$true] %s65
      %68 = dma.vmem_to_hbm [thread:$0]  %s66, 16, %s2, [#allocation3]
    $region13: #{main_prior_forward.1} parent=1 // pred_fallthru
      _
    // Predicated region
    $region14: #{main_prior_forward.1} parent=1 // pred_check
      _
    $region15: #{main_prior_forward.1} parent=1 // pred_check_branch
      %70 = sbr.rel (0) target = $region17
    $region16: #{main_prior_forward.1} parent=1 // pred_region
      %71 = dma.done [#allocation3], 16
    $region17: #{main_prior_forward.1} parent=1 // pred_fallthru
      _
    %72 = vsyncpa [#allocation3], 1

</llo_original>
